<compile_context>
chip_gen: v6e
topology: v6e:2x2x1
jax: 0.10.0
libtpu: 0.0.40
codegen_flags: <defaults>
</compile_context>

<pallas_src>
import functools

import jax
import jax.numpy as jnp
from jax.experimental import pallas as pl
from jax.experimental.pallas import tpu as pltpu


# --------------------- small / latency-bound path (grid-free) ---------------------

def _concat4_vmem_kernel(x1_ref, x2_ref, o_ref):
    """out = cat([x1, x2, x1, x2], dim=0); everything resident in VMEM."""
    B = x1_ref.shape[0]
    x1 = x1_ref[...]
    x2 = x2_ref[...]
    o_ref[pl.ds(0 * B, B)] = x1
    o_ref[pl.ds(1 * B, B)] = x2
    o_ref[pl.ds(2 * B, B)] = x1
    o_ref[pl.ds(3 * B, B)] = x2


# ------------------ large / bandwidth-bound path (staged via VMEM) ------------------

def _concat4_staged_kernel(x1_ref, x2_ref, o_hbm, sems, *, tm, B):
    """Per grid step: x1/x2 row-slab tiles arrive in VMEM via the BlockSpec
    pipeline (each read from HBM once); fan each out to two output slabs with
    overlapped VMEM->HBM DMAs."""
    i = pl.program_id(0)
    row = pl.multiple_of(i * tm, tm)
    copies = [
        pltpu.make_async_copy(x1_ref, o_hbm.at[pl.ds(0 * B + row, tm)], sems.at[0]),
        pltpu.make_async_copy(x2_ref, o_hbm.at[pl.ds(1 * B + row, tm)], sems.at[1]),
        pltpu.make_async_copy(x1_ref, o_hbm.at[pl.ds(2 * B + row, tm)], sems.at[2]),
        pltpu.make_async_copy(x2_ref, o_hbm.at[pl.ds(3 * B + row, tm)], sems.at[3]),
    ]
    # Start all four, then wait: the DMA engines overlap the writes, and the
    # waits keep the double-buffered input tiles safe for the next prefetch.
    for cp in copies:
        cp.start()
    for cp in copies:
        cp.wait()


# ----------------------------------- wrapper -----------------------------------

_SMALL_TOTAL_BYTES = 4 << 20     # grid-free path if 6*|x| fits comfortably in VMEM
_TILE_BUDGET_BYTES = 4 << 20     # per-input VMEM tile for the staged path (v7x-safe)


def _pick_tile_rows(B, row_bytes, budget_bytes, max_tile_rows=None):
    cap = B if max_tile_rows is None else min(B, max_tile_rows)
    for tm in range(cap, 0, -1):
        if B % tm == 0 and tm * row_bytes <= budget_bytes:
            return tm
    return 1


def model_forward(x1, x2, x3=None, x4=None, x5=None, *, max_tile_rows=None):
    """Pallas equivalent of Model.forward (x3..x5 are unused, as in PyTorch)."""
    assert x1.shape == x2.shape and x1.dtype == x2.dtype
    B = x1.shape[0]
    trailing = x1.shape[1:]
    out_shape = jax.ShapeDtypeStruct((4 * B,) + trailing, x1.dtype)

    itemsize = jnp.dtype(x1.dtype).itemsize
    in_bytes = x1.size * itemsize
    row_bytes = in_bytes // B
    # HBM traffic: read x1 + x2 once (2|x|), write 4 slabs (4|x|) -> 6|x| minimum.
    cost = pl.CostEstimate(flops=0, transcendentals=0, bytes_accessed=6 * in_bytes)

    if max_tile_rows is None and 6 * in_bytes <= _SMALL_TOTAL_BYTES:
        # Latency-bound regime: single grid-free VMEM kernel, no manual DMAs.
        return pl.pallas_call(
            _concat4_vmem_kernel,
            out_shape=out_shape,
            in_specs=[pl.BlockSpec(memory_space=pltpu.MemorySpace.VMEM)] * 2,
            out_specs=pl.BlockSpec(memory_space=pltpu.MemorySpace.VMEM),
            cost_estimate=cost,
        )(x1, x2)

    # Bandwidth-bound regime: row-slab tiles staged through VMEM once each.
    tm = _pick_tile_rows(B, row_bytes, _TILE_BUDGET_BYTES, max_tile_rows)
    tile_bytes = tm * row_bytes
    # 2 inputs x 2 pipeline buffers x tile, plus slack; capped below v7x's 64 MiB.
    vmem_limit = min(max(4 * tile_bytes + (4 << 20), 32 << 20), 56 << 20)

    block = (tm,) + trailing
    zeros = (0,) * len(trailing)
    kernel = functools.partial(_concat4_staged_kernel, tm=tm, B=B)

    return pl.pallas_call(
        kernel,
        out_shape=out_shape,
        grid_spec=pltpu.PrefetchScalarGridSpec(
            num_scalar_prefetch=0,
            grid=(B // tm,),
            in_specs=[
                pl.BlockSpec(block, lambda i: (i,) + zeros),
                pl.BlockSpec(block, lambda i: (i,) + zeros),
            ],
            out_specs=pl.BlockSpec(memory_space=pl.ANY),   # written via DMA
            scratch_shapes=[pltpu.SemaphoreType.DMA((4,))],
        ),
        compiler_params=pltpu.CompilerParams(
            dimension_semantics=("parallel",),   # shards grid across 2 TCs on v7x
            vmem_limit_bytes=vmem_limit,
        ),
        cost_estimate=cost,
    )(x1, x2)


def model_forward_ref(x1, x2, x3=None, x4=None, x5=None):
    t0 = jnp.concatenate([x1, x2], axis=0)
    t2 = t0  # identity slices
    return jnp.concatenate([t0, t2], axis=0)


if __name__ == "__main__":
    key = jax.random.PRNGKey(0)
    k1, k2, k3, k4, k5 = jax.random.split(key, 5)

    # Small rank-4 shapes consistent with the module (original fuzz shapes were
    # absurdly large); last dim = 128 for lane alignment.
    shape = (2, 4, 8, 128)
    x1 = jax.random.normal(k1, shape, dtype=jnp.float32)
    x2 = jax.random.normal(k2, shape, dtype=jnp.float32)
    # Unused inputs (the PyTorch forward ignores x3, x4, x5).
    x3 = jax.random.normal(k3, shape, dtype=jnp.float32)
    x4 = jax.random.normal(k4, shape, dtype=jnp.float32)
    x5 = jax.random.normal(k5, shape, dtype=jnp.float32)

    # 1) Grid-free VMEM path (small inputs).
    out = jax.block_until_ready(model_forward(x1, x2, x3, x4, x5))
    ref = model_forward_ref(x1, x2)
    assert out.shape == (8, 4, 8, 128), out.shape
    assert jnp.array_equal(out, ref), "small-path mismatch vs. reference concat"

    # 2) Staged/tiled path (large-input code path), exercised on a small example
    #    by forcing a 2-row tile -> 4 grid steps.
    shape2 = (8, 4, 8, 128)
    y1 = jax.random.normal(k3, shape2, dtype=jnp.float32)
    y2 = jax.random.normal(k4, shape2, dtype=jnp.float32)
    out2 = jax.block_until_ready(model_forward(y1, y2, max_tile_rows=2))
    ref2 = model_forward_ref(y1, y2)
    assert out2.shape == (32, 4, 8, 128), out2.shape
    assert jnp.array_equal(out2, ref2), "tiled-path mismatch vs. reference concat"

    print("KERNEL_OK")
</pallas_src>

<mosaic_0001>
module attributes {stable_mosaic.version = 11 : i64} {
  func.func @_concat4_vmem_kernel(%arg0: memref<2x4x8x128xf32, #tpu.memory_space<vmem>>, %arg1: memref<2x4x8x128xf32, #tpu.memory_space<vmem>>, %arg2: memref<8x4x8x128xf32, #tpu.memory_space<vmem>>) attributes {dimension_semantics = [], scalar_prefetch = 0 : i64, scratch_operands = 0 : i64, tpu.core_type = #tpu.core_type<tc>} {
    %c0 = arith.constant 0 : index
    %c0_0 = arith.constant 0 : index
    %c0_1 = arith.constant 0 : index
    %c0_2 = arith.constant 0 : index
    %0 = vector.load %arg0[%c0, %c0_0, %c0_1, %c0_2] : memref<2x4x8x128xf32, #tpu.memory_space<vmem>>, vector<2x4x8x128xf32>
    %c0_3 = arith.constant 0 : index
    %c0_4 = arith.constant 0 : index
    %c0_5 = arith.constant 0 : index
    %c0_6 = arith.constant 0 : index
    %1 = vector.load %arg1[%c0_3, %c0_4, %c0_5, %c0_6] : memref<2x4x8x128xf32, #tpu.memory_space<vmem>>, vector<2x4x8x128xf32>
    %c0_7 = arith.constant 0 : index
    %c0_8 = arith.constant 0 : index
    %c0_9 = arith.constant 0 : index
    %c0_10 = arith.constant 0 : index
    %2 = vector.load %arg2[%c0_7, %c0_8, %c0_9, %c0_10] : memref<8x4x8x128xf32, #tpu.memory_space<vmem>>, vector<2x4x8x128xf32>
    tpu.vector_store %arg2[%c0_7, %c0_8, %c0_9, %c0_10], %0 {strides = array<i32>} : memref<8x4x8x128xf32, #tpu.memory_space<vmem>>, vector<2x4x8x128xf32>,
    %c2 = arith.constant 2 : index
    %c0_11 = arith.constant 0 : index
    %c0_12 = arith.constant 0 : index
    %c0_13 = arith.constant 0 : index
    %3 = vector.load %arg2[%c2, %c0_11, %c0_12, %c0_13] : memref<8x4x8x128xf32, #tpu.memory_space<vmem>>, vector<2x4x8x128xf32>
    tpu.vector_store %arg2[%c2, %c0_11, %c0_12, %c0_13], %1 {strides = array<i32>} : memref<8x4x8x128xf32, #tpu.memory_space<vmem>>, vector<2x4x8x128xf32>,
    %c4 = arith.constant 4 : index
    %c0_14 = arith.constant 0 : index
    %c0_15 = arith.constant 0 : index
    %c0_16 = arith.constant 0 : index
    %4 = vector.load %arg2[%c4, %c0_14, %c0_15, %c0_16] : memref<8x4x8x128xf32, #tpu.memory_space<vmem>>, vector<2x4x8x128xf32>
    tpu.vector_store %arg2[%c4, %c0_14, %c0_15, %c0_16], %0 {strides = array<i32>} : memref<8x4x8x128xf32, #tpu.memory_space<vmem>>, vector<2x4x8x128xf32>,
    %c6 = arith.constant 6 : index
    %c0_17 = arith.constant 0 : index
    %c0_18 = arith.constant 0 : index
    %c0_19 = arith.constant 0 : index
    %5 = vector.load %arg2[%c6, %c0_17, %c0_18, %c0_19] : memref<8x4x8x128xf32, #tpu.memory_space<vmem>>, vector<2x4x8x128xf32>
    tpu.vector_store %arg2[%c6, %c0_17, %c0_18, %c0_19], %1 {strides = array<i32>} : memref<8x4x8x128xf32, #tpu.memory_space<vmem>>, vector<2x4x8x128xf32>,
    return
  }
}

</mosaic_0001>

<llo_original>
// kernel: tpu_custom_call.1
$region0: #{tpu_custom_call.1}
  #allocation0 [shape = 'u32[]', space=smem, size = 0x4, offset = 0x4, fixed_abs, tag = 'smem constant byte address 0x4 - core index']
  #allocation1 [shape = 'u32[144,128]{1,0:T(1,128)}', space=vmem, size = 0x12000, scoped, tag = 'internal scratch']
  %s0 = inlined_call_operand.hbm [shape: f32[2,4,8,128], index: 0, kind: input, shape index: {}]
  %s1 = inlined_call_operand.hbm [shape: f32[2,4,8,128], index: 1, kind: input, shape index: {}]
  %s2 = inlined_call_operand.hbm [shape: f32[8,4,8,128], index: 2, kind: output, shape index: {}]
  %s3 = sld [smem:[#allocation0]]
  $region26: #{tpu_custom_call.1} parent=0
    _
  %s5 = ssub.s32 1, %s3
  %s6 = scalar_select 0, %s5, %s3
  $region1: #{tpu_custom_call.1} parent=0
    #allocation2 [shape = 'u8[32768]{0}', space=vmem, size = 0x8000, scoped, tag = 'input window, operand 0, single buffered']
    #allocation3 [shape = 's32[1]{0}', space=sflag, size = 0x4, scoped, tag = 'scoped memory for tpu_custom_call.1']
    #allocation4 [shape = 's32[1]{0}', space=sflag, size = 0x4, scoped, tag = 'scoped memory for tpu_custom_call.1']
    #allocation5 [shape = 'u8[32768]{0}', space=vmem, size = 0x8000, scoped, tag = 'input window, operand 1, single buffered']
    #allocation6 [shape = 's32[1]{0}', space=sflag, size = 0x4, scoped, tag = 'scoped memory for tpu_custom_call.1']
    #allocation7 [shape = 'u8[131072]{0}', space=vmem, size = 0x20000, scoped, tag = 'output window, operand 0, single buffered']
    %7 = vsyncpa [#allocation3], 0
    %8 = vsyncpa [#allocation6], 0
    %9 = vsyncpa [#allocation4], 0
    // Predicated region
    $region2: #{tpu_custom_call.1} parent=1 // pred_check
      _
    $region3: #{tpu_custom_call.1} parent=1 // pred_check_branch
      %11 = sbr.rel (0) target = $region5
    $region4: #{tpu_custom_call.1} parent=1 // pred_region
      %s13 = ssub.s32 1024, 1024
      %14 = vsyncadd [#allocation3], %s13
      %s15 = sshll.u32 [#allocation2], 4
      %s16 = int_to_ptr.vmem [resolvable:$true] %s15
      %21 = dma.hbm_to_vmem [thread:$0]  %s0, 1024, %s16, [#allocation3], 128, 128, 8
    $region5: #{tpu_custom_call.1} parent=1 // pred_fallthru
      _
    // Predicated region
    $region6: #{tpu_custom_call.1} parent=1 // pred_check
      _
    $region7: #{tpu_custom_call.1} parent=1 // pred_check_branch
      %23 = sbr.rel (0) target = $region9
    $region8: #{tpu_custom_call.1} parent=1 // pred_region
      %s25 = ssub.s32 1024, 1024
      %26 = vsyncadd [#allocation6], %s25
      %s27 = sshll.u32 [#allocation5], 4
      %s28 = int_to_ptr.vmem [resolvable:$true] %s27
      %33 = dma.hbm_to_vmem [thread:$0]  %s1, 1024, %s28, [#allocation6], 128, 128, 8
    $region9: #{tpu_custom_call.1} parent=1 // pred_fallthru
      _
    // Predicated region
    $region10: #{tpu_custom_call.1} parent=1 // pred_check
      _
    $region11: #{tpu_custom_call.1} parent=1 // pred_check_branch
      %35 = sbr.rel (0) target = $region13
    $region12: #{tpu_custom_call.1} parent=1 // pred_region
      %36 = dma.done [#allocation3], 1024
    $region13: #{tpu_custom_call.1} parent=1 // pred_fallthru
      _
    // Predicated region
    $region14: #{tpu_custom_call.1} parent=1 // pred_check
      _
    $region15: #{tpu_custom_call.1} parent=1 // pred_check_branch
      %38 = sbr.rel (0) target = $region17
    $region16: #{tpu_custom_call.1} parent=1 // pred_region
      %39 = dma.done [#allocation6], 1024
    $region17: #{tpu_custom_call.1} parent=1 // pred_fallthru
      _
    %v40 = vld [vmem:[#allocation2] sm:$0xff]
    %v41 = vld [vmem:[#allocation2 + $0x8] sm:$0xff]
    %v42 = vld [vmem:[#allocation2 + $0x10] sm:$0xff]
    %v43 = vld [vmem:[#allocation2 + $0x18] sm:$0xff]
    %v44 = vld [vmem:[#allocation2 + $0x20] sm:$0xff]
    %v45 = vld [vmem:[#allocation2 + $0x28] sm:$0xff]
    %v46 = vld [vmem:[#allocation2 + $0x30] sm:$0xff]
    %v47 = vld [vmem:[#allocation2 + $0x38] sm:$0xff]
    %v48 = vld [vmem:[#allocation5] sm:$0xff]
    %v49 = vld [vmem:[#allocation5 + $0x8] sm:$0xff]
    %v50 = vld [vmem:[#allocation5 + $0x10] sm:$0xff]
    %v51 = vld [vmem:[#allocation5 + $0x18] sm:$0xff]
    %v52 = vld [vmem:[#allocation5 + $0x20] sm:$0xff]
    %v53 = vld [vmem:[#allocation5 + $0x28] sm:$0xff]
    %v54 = vld [vmem:[#allocation5 + $0x30] sm:$0xff]
    %v55 = vld [vmem:[#allocation5 + $0x38] sm:$0xff]
    %56 = vst [vmem:[#allocation7] sm:$0xff] %v40
    %57 = vst [vmem:[#allocation7 + $0x8] sm:$0xff] %v41
    %58 = vst [vmem:[#allocation7 + $0x10] sm:$0xff] %v42
    %59 = vst [vmem:[#allocation7 + $0x18] sm:$0xff] %v43
    %60 = vst [vmem:[#allocation7 + $0x20] sm:$0xff] %v44
    %61 = vst [vmem:[#allocation7 + $0x28] sm:$0xff] %v45
    %62 = vst [vmem:[#allocation7 + $0x30] sm:$0xff] %v46
    %63 = vst [vmem:[#allocation7 + $0x38] sm:$0xff] %v47
    %s64 = scalar_lea.vmem [#allocation7], 64
    %65 = vst [vmem:[%s64] sm:$0xff] %v48
    %66 = vst [vmem:[%s64 + $0x8] sm:$0xff] %v49
    %67 = vst [vmem:[%s64 + $0x10] sm:$0xff] %v50
    %68 = vst [vmem:[%s64 + $0x18] sm:$0xff] %v51
    %69 = vst [vmem:[%s64 + $0x20] sm:$0xff] %v52
    %70 = vst [vmem:[%s64 + $0x28] sm:$0xff] %v53
    %71 = vst [vmem:[%s64 + $0x30] sm:$0xff] %v54
    %72 = vst [vmem:[%s64 + $0x38] sm:$0xff] %v55
    %s73 = scalar_lea.vmem [#allocation7], 128
    %74 = vst [vmem:[%s73] sm:$0xff] %v40
    %75 = vst [vmem:[%s73 + $0x8] sm:$0xff] %v41
    %76 = vst [vmem:[%s73 + $0x10] sm:$0xff] %v42
    %77 = vst [vmem:[%s73 + $0x18] sm:$0xff] %v43
    %78 = vst [vmem:[%s73 + $0x20] sm:$0xff] %v44
    %79 = vst [vmem:[%s73 + $0x28] sm:$0xff] %v45
    %80 = vst [vmem:[%s73 + $0x30] sm:$0xff] %v46
    %81 = vst [vmem:[%s73 + $0x38] sm:$0xff] %v47
    %s82 = scalar_lea.vmem [#allocation7], 192
    %83 = vst [vmem:[%s82] sm:$0xff] %v48
    %84 = vst [vmem:[%s82 + $0x8] sm:$0xff] %v49
    %85 = vst [vmem:[%s82 + $0x10] sm:$0xff] %v50
    %86 = vst [vmem:[%s82 + $0x18] sm:$0xff] %v51
    %87 = vst [vmem:[%s82 + $0x20] sm:$0xff] %v52
    %88 = vst [vmem:[%s82 + $0x28] sm:$0xff] %v53
    %89 = vst [vmem:[%s82 + $0x30] sm:$0xff] %v54
    %90 = vst [vmem:[%s82 + $0x38] sm:$0xff] %v55
    // Predicated region
    $region18: #{tpu_custom_call.1} parent=1 // pred_check
      _
    $region19: #{tpu_custom_call.1} parent=1 // pred_check_branch
      %92 = sbr.rel (0) target = $region21
    $region20: #{tpu_custom_call.1} parent=1 // pred_region
      %s94 = ssub.s32 4096, 4096
      %95 = vsyncadd [#allocation4], %s94
      %s96 = sshll.u32 [#allocation7], 4
      %s97 = int_to_ptr.vmem [resolvable:$true] %s96
      %102 = dma.vmem_to_hbm [thread:$0]  %s97, 4096, %s2, [#allocation4], 128, 128, 8
    $region21: #{tpu_custom_call.1} parent=1 // pred_fallthru
      _
    // Predicated region
    $region22: #{tpu_custom_call.1} parent=1 // pred_check
      _
    $region23: #{tpu_custom_call.1} parent=1 // pred_check_branch
      %104 = sbr.rel (0) target = $region25
    $region24: #{tpu_custom_call.1} parent=1 // pred_region
      %105 = dma.done [#allocation4], 4096
    $region25: #{tpu_custom_call.1} parent=1 // pred_fallthru
      _
    %106 = vsyncpa [#allocation3], 1
    %107 = vsyncpa [#allocation6], 1
    %108 = vsyncpa [#allocation4], 1

</llo_original>
